<compile_context>
chip_gen: v7x
topology: tpu7x:2x2x1
jax: 0.10.0
libtpu: 0.0.40
codegen_flags: <defaults>
</compile_context>

<pallas_src>
import functools
import math

import jax
import jax.numpy as jnp
import numpy as np
from jax.experimental import pallas as pl
from jax.experimental.pallas import tpu as pltpu


def _fused_dilated_attn_kernel(qkv_ref, wall_ref, ball_ref, wout_ref, bout_ref,
                               out_ref, probs_ref, *,
                               seq_len, kernel_size, dilations, paddings,
                               split, h_d, d_k, scale):
    """One batch element, both dilation groups, with fused out_proj.

    qkv_ref : (1, D, 3*S)  channel-major stacked [q | k | v] along lanes
    wall    : (D, D)       block-diagonal permuted projection weight
    ball    : (D, 1)       permuted projection bias
    wout    : (D, D)       out_proj weight (applied as W @ x)
    bout    : (D, 1)       out_proj bias
    out_ref : (1, D, S)    final output, channel-major (lane-dense in S)
    probs_ref: (1, G, K, h_d, S)  attention probabilities (lane-dense in S)
    """
    S = seq_len
    xT = qkv_ref[0]                                   # (D, 3S)

    # Single fused projection: q, k, v and both dilation groups in one matmul.
    proj = (jnp.dot(wall_ref[...], xT, preferred_element_type=jnp.float32)
            + ball_ref[...])                          # (D, 3S)

    group_outs = []
    for g, (dil, pad) in enumerate(zip(dilations, paddings)):
        r0, r1 = g * split, (g + 1) * split
        # qk scale folded into q once per group (instead of per-tap on scores).
        qg = proj[r0:r1, 0:S] * scale                 # (split, S)
        kg = proj[r0:r1, S:2 * S]
        vg = proj[r0:r1, 2 * S:3 * S]

        # Pad once per tensor; every tap is then a static lane slice
        # (replaces 2*kernel_size full-tile concatenate copies).
        if pad > 0:
            zpad = jnp.zeros((split, pad), jnp.float32)
            kpad = jnp.concatenate([zpad, kg, zpad], axis=1)   # (split, S+2p)
            vpad = jnp.concatenate([zpad, vg, zpad], axis=1)
        else:
            kpad, vpad = kg, vg

        # Pass 1: per-tap, per-head scores via sublane reduce (no MXU).
        scores = []
        for t in range(kernel_size):
            kt = kpad[:, t * dil:t * dil + S]                   # (split, S)
            prod = qg * kt
            # (split, S) -> (h_d, d_k, S): pseudo-heads are contiguous d_k-row
            # blocks, so this is a free re-grouping followed by a sublane sum.
            st = prod.reshape(h_d, d_k, S).sum(axis=1)          # (h_d, S)
            scores.append(st)

        m = scores[0]
        for st in scores[1:]:
            m = jnp.maximum(m, st)

        # Pass 2: exp + accumulate.  v taps are re-sliced here instead of
        # being kept live across the softmax (cuts VMEM/vreg pressure).
        exps = []
        denom = jnp.zeros((h_d, S), jnp.float32)
        acc = jnp.zeros((split, S), jnp.float32)
        for t in range(kernel_size):
            e = jnp.exp(scores[t] - m)                          # (h_d, S)
            exps.append(e)
            denom = denom + e
            e_full = jnp.broadcast_to(e[:, None, :],
                                      (h_d, d_k, S)).reshape(split, S)
            vt = vpad[:, t * dil:t * dil + S]
            acc = acc + e_full * vt

        # One EUP reciprocal + one Newton step instead of K divides.
        inv = pl.reciprocal(denom, approx=True)
        inv = inv * (2.0 - denom * inv)                         # (h_d, S)

        # attn_drop is identity at inference (eval mode).
        for t in range(kernel_size):
            probs_ref[0, g, t] = (exps[t] * inv).astype(probs_ref.dtype)

        inv_full = jnp.broadcast_to(inv[:, None, :],
                                    (h_d, d_k, S)).reshape(split, S)
        group_outs.append(acc * inv_full)                       # (split, S)

    # Fused out_proj: attention output never round-trips HBM.
    attn_cat = jnp.concatenate(group_outs, axis=0)              # (D, S)
    out_ref[0] = (jnp.dot(wout_ref[...], attn_cat,
                          preferred_element_type=jnp.float32)
                  + bout_ref[...]).astype(out_ref.dtype)
    # proj_drop is identity at inference (eval mode).


class DilatedMultiHeadAttentionPallas:
    def __init__(self, d_model, n_heads, kernel_size=3, dilation=(3, 1),
                 qk_scale=None, key=None):
        self.d_model = d_model
        self.n_heads = n_heads
        self.d_k = d_model // n_heads
        self.kernel_size = kernel_size
        self.dilation = list(dilation)
        self.num_dilation = len(self.dilation)
        self.h_d = n_heads // self.num_dilation
        self.split = d_model // self.num_dilation
        self.scale = qk_scale or self.d_k ** (-0.5)
        self.paddings = [d * (kernel_size - 1) // 2 for d in self.dilation]

        key = jax.random.PRNGKey(42) if key is None else key
        keys = jax.random.split(key, 2 * self.num_dilation + 2)
        bound = 1.0 / math.sqrt(self.split)
        self.lin_W = [jax.random.uniform(keys[2 * i], (self.split, self.split),
                                         jnp.float32, -bound, bound)
                      for i in range(self.num_dilation)]
        self.lin_b = [jax.random.uniform(keys[2 * i + 1], (self.split,),
                                         jnp.float32, -bound, bound)
                      for i in range(self.num_dilation)]
        bo = 1.0 / math.sqrt(d_model)
        self.out_W = jax.random.uniform(keys[-2], (d_model, d_model),
                                        jnp.float32, -bo, bo)
        self.out_b = jax.random.uniform(keys[-1], (d_model,),
                                        jnp.float32, -bo, bo)

        # Channel permutation induced by torch's reshape of (d_k, h_d) -> (h_d, d_k):
        # pseudo-channel n  ->  original channel (n % h_d)*d_k + (n // h_d)
        n = np.arange(self.split)
        self.perm = jnp.asarray((n % self.h_d) * self.d_k + (n // self.h_d),
                                dtype=np.int32)

        # Block-diagonal projection weight with permuted output channels, so a
        # single (D, D) @ (D, 3S) matmul projects q, k, v for both groups.
        W_all = jnp.zeros((d_model, d_model), jnp.float32)
        b_parts = []
        for i in range(self.num_dilation):
            blk = self.lin_W[i][self.perm, :]          # (split, split)
            W_all = W_all.at[i * self.split:(i + 1) * self.split,
                             i * self.split:(i + 1) * self.split].set(blk)
            b_parts.append(self.lin_b[i][self.perm])
        self.W_all = W_all
        self.b_all = jnp.concatenate(b_parts)[:, None]          # (D, 1)
        self.out_b_col = self.out_b[:, None]                    # (D, 1)

    def __call__(self, q, k, v):
        bs, seq_len, d_model = q.shape
        assert d_model == self.d_model
        # TODO(synk): degenerate unfold1d branch (seq_len + 2*pad < kernel_size
        # -> all-zero patches) not implemented.
        assert seq_len + 2 * min(self.paddings) >= self.kernel_size

        # Channel-major stacked operand: (B, D, 3S), lanes = sequence.
        qkv_T = jnp.transpose(jnp.concatenate([q, k, v], axis=1), (0, 2, 1))

        kern = functools.partial(
            _fused_dilated_attn_kernel,
            seq_len=seq_len, kernel_size=self.kernel_size,
            dilations=tuple(self.dilation), paddings=tuple(self.paddings),
            split=self.split, h_d=self.h_d, d_k=self.d_k, scale=self.scale)

        S3 = 3 * seq_len
        # TODO(synk): for production seq_len on v7x (64 MiB VMEM), add an S
        # grid axis with halo blocks instead of whole-sequence-per-step tiles.
        out_T, probs = pl.pallas_call(
            kern,
            grid=(bs,),
            in_specs=[
                pl.BlockSpec((1, d_model, S3), lambda b: (b, 0, 0)),
                pl.BlockSpec((d_model, d_model), lambda b: (0, 0)),
                pl.BlockSpec((d_model, 1), lambda b: (0, 0)),
                pl.BlockSpec((d_model, d_model), lambda b: (0, 0)),
                pl.BlockSpec((d_model, 1), lambda b: (0, 0)),
            ],
            out_specs=[
                pl.BlockSpec((1, d_model, seq_len), lambda b: (b, 0, 0)),
                pl.BlockSpec((1, self.num_dilation, self.kernel_size,
                              self.h_d, seq_len),
                             lambda b: (b, 0, 0, 0, 0)),
            ],
            out_shape=[
                jax.ShapeDtypeStruct((bs, d_model, seq_len), jnp.float32),
                jax.ShapeDtypeStruct((bs, self.num_dilation, self.kernel_size,
                                      self.h_d, seq_len), jnp.float32),
            ],
            compiler_params=pltpu.CompilerParams(
                dimension_semantics=("parallel",),
                vmem_limit_bytes=32 * 1024 * 1024),
        )(qkv_T, self.W_all, self.b_all, self.out_W, self.out_b_col)

        out = jnp.transpose(out_T, (0, 2, 1))                   # (B, S, D)
        # kernel emits (B, G, K, h_d, S); torch layout is (B, n_heads, S, K)
        attn_probs = jnp.transpose(probs, (0, 1, 3, 4, 2)).reshape(
            bs, self.n_heads, seq_len, self.kernel_size)
        return out, attn_probs


def _reference(mod, q, k, v):
    """Plain-JAX transliteration of the PyTorch forward (for self-check)."""
    bs, seq_len, d_model = q.shape
    split, h_d, d_k, ks = mod.split, mod.h_d, mod.d_k, mod.kernel_size
    outs, probs_all = [], []
    for i, dil in enumerate(mod.dilation):
        pad = mod.paddings[i]
        W, b = mod.lin_W[i], mod.lin_b[i]
        sl = slice(i * split, (i + 1) * split)
        qi = q[..., sl] @ W.T + b
        ki = k[..., sl] @ W.T + b
        vi = v[..., sl] @ W.T + b

        def to_dkhd(x):
            x = x.reshape(bs, seq_len, h_d, d_k)
            x = jnp.transpose(x, (0, 2, 1, 3))
            return jnp.transpose(x, (0, 3, 1, 2))   # (bs, d_k, h_d, seq)

        q_i, k_i, v_i = to_dkhd(qi), to_dkhd(ki), to_dkhd(vi)

        def unfold1d(x):
            x2 = x.reshape(bs * d_k, h_d, seq_len)
            xp = jnp.pad(x2, ((0, 0), (0, 0), (pad, pad)))
            eff = ks + (ks - 1) * (dil - 1)
            idx = jnp.arange(seq_len)[:, None] + jnp.arange(0, eff, dil)[None, :]
            return xp[:, :, idx]                    # (bs*d_k, h_d, seq, ks)

        k_p, v_p = unfold1d(k_i), unfold1d(v_i)
        q_r = q_i.reshape(bs * h_d, d_k, seq_len)[..., None]
        k_r = k_p.reshape(bs * h_d, d_k, seq_len, -1)
        scores = (q_r * k_r).sum(axis=1) * mod.scale
        probs = jax.nn.softmax(scores, axis=-1)
        v_r = v_p.reshape(bs * h_d, d_k, seq_len, -1)
        a_out = (probs[:, None] * v_r).sum(axis=-1)
        a_out = a_out.reshape(bs, h_d, d_k, seq_len)
        a_out = jnp.transpose(a_out, (0, 3, 1, 2)).reshape(bs, seq_len, h_d * d_k)
        outs.append(a_out)
        probs_all.append(probs.reshape(bs, h_d, seq_len, -1))
    attn_out = jnp.concatenate(outs, axis=-1)
    attn_probs = jnp.concatenate(probs_all, axis=1)
    out = attn_out @ mod.out_W.T + mod.out_b
    return out, attn_probs


if __name__ == "__main__":
    d_model, n_heads, seq_len, bs = 32, 4, 16, 2
    mod = DilatedMultiHeadAttentionPallas(d_model, n_heads)

    key = jax.random.PRNGKey(0)
    kq, kk, kv = jax.random.split(key, 3)
    q = jax.random.normal(kq, (bs, seq_len, d_model), jnp.float32)
    k = jax.random.normal(kk, (bs, seq_len, d_model), jnp.float32)
    v = jax.random.normal(kv, (bs, seq_len, d_model), jnp.float32)

    out, probs = mod(q, k, v)
    jax.block_until_ready((out, probs))

    ref_out, ref_probs = _reference(mod, q, k, v)
    np.testing.assert_allclose(np.asarray(out), np.asarray(ref_out),
                               rtol=2e-3, atol=2e-3)
    np.testing.assert_allclose(np.asarray(probs), np.asarray(ref_probs),
                               rtol=2e-3, atol=2e-3)
    print("KERNEL_OK")
</pallas_src>

<mosaic_0001>
module attributes {stable_mosaic.version = 11 : i64} {
  func.func @_fused_dilated_attn_kernel(%arg0: i32, %arg1: memref<1x32x48xf32, #tpu.memory_space<vmem>>, %arg2: memref<32x32xf32, #tpu.memory_space<vmem>>, %arg3: memref<32x1xf32, #tpu.memory_space<vmem>>, %arg4: memref<32x32xf32, #tpu.memory_space<vmem>>, %arg5: memref<32x1xf32, #tpu.memory_space<vmem>>, %arg6: memref<1x32x16xf32, #tpu.memory_space<vmem>>, %arg7: memref<1x2x3x2x16xf32, #tpu.memory_space<vmem>>) attributes {dimension_semantics = [#tpu.dimension_semantics<parallel>], iteration_bounds = array<i64: 2>, scalar_prefetch = 0 : i64, scratch_operands = 0 : i64, tpu.core_type = #tpu.core_type<tc>, window_params = [{transform_indices = @transform_0, window_bounds = array<i64: 1, 32, 48>}, {pipeline_mode = #tpu.pipeline_mode<synchronous>, transform_indices = @transform_1, window_bounds = array<i64: 32, 32>}, {pipeline_mode = #tpu.pipeline_mode<synchronous>, transform_indices = @transform_2, window_bounds = array<i64: 32, 1>}, {pipeline_mode = #tpu.pipeline_mode<synchronous>, transform_indices = @transform_3, window_bounds = array<i64: 32, 32>}, {pipeline_mode = #tpu.pipeline_mode<synchronous>, transform_indices = @transform_4, window_bounds = array<i64: 32, 1>}, {transform_indices = @transform_5, window_bounds = array<i64: 1, 32, 16>}, {transform_indices = @transform_6, window_bounds = array<i64: 1, 2, 3, 2, 16>}]} {
    %c0 = arith.constant 0 : index
    %c0_0 = arith.constant 0 : index
    %c0_1 = arith.constant 0 : index
    %0 = vector.load %arg1[%c0, %c0_0, %c0_1] : memref<1x32x48xf32, #tpu.memory_space<vmem>>, vector<1x32x48xf32>
    %1 = vector.shape_cast %0 : vector<1x32x48xf32> to vector<32x48xf32>
    %c0_2 = arith.constant 0 : index
    %c0_3 = arith.constant 0 : index
    %2 = vector.load %arg2[%c0_2, %c0_3] : memref<32x32xf32, #tpu.memory_space<vmem>>, vector<32x32xf32>
    %cst = arith.constant dense<0.000000e+00> : vector<32x48xf32>
    %3 = tpu.matmul %2, %1, %cst {dimension_numbers = #tpu.dot_dimension_numbers<[1], [0], [0], [1], [0, 0, 1, 1], [], []>} : vector<32x32xf32>, vector<32x48xf32>, vector<32x48xf32> -> vector<32x48xf32>
    %c0_4 = arith.constant 0 : index
    %c0_5 = arith.constant 0 : index
    %4 = vector.load %arg3[%c0_4, %c0_5] : memref<32x1xf32, #tpu.memory_space<vmem>>, vector<32x1xf32>
    %5 = vector.broadcast %4 : vector<32x1xf32> to vector<32x48xf32>
    %6 = arith.addf %3, %5 : vector<32x48xf32>
    %7 = vector.extract_strided_slice %6 {offsets = [0, 0], sizes = [16, 16], strides = [1, 1]} : vector<32x48xf32> to vector<16x16xf32>
    %cst_6 = arith.constant 0.353553385 : f32
    %8 = vector.broadcast %cst_6 : f32 to vector<16x16xf32>
    %9 = arith.mulf %7, %8 : vector<16x16xf32>
    %10 = vector.extract_strided_slice %6 {offsets = [0, 16], sizes = [16, 16], strides = [1, 1]} : vector<32x48xf32> to vector<16x16xf32>
    %11 = vector.extract_strided_slice %6 {offsets = [0, 32], sizes = [16, 16], strides = [1, 1]} : vector<32x48xf32> to vector<16x16xf32>
    %cst_7 = arith.constant 0.000000e+00 : f32
    %12 = vector.broadcast %cst_7 : f32 to vector<16x3xf32>
    %13 = tpu.concatenate %12, %10, %12 in 1 : vector<16x3xf32>, vector<16x16xf32>, vector<16x3xf32> -> vector<16x22xf32>
    %14 = tpu.concatenate %12, %11, %12 in 1 : vector<16x3xf32>, vector<16x16xf32>, vector<16x3xf32> -> vector<16x22xf32>
    %15 = vector.extract_strided_slice %13 {offsets = [0, 0], sizes = [16, 16], strides = [1, 1]} : vector<16x22xf32> to vector<16x16xf32>
    %16 = arith.mulf %9, %15 : vector<16x16xf32>
    %17 = vector.shape_cast %16 : vector<16x16xf32> to vector<2x8x16xf32>
    %cst_8 = arith.constant dense<0.000000e+00> : vector<2x16xf32>
    %18 = vector.multi_reduction <add>, %17, %cst_8 [1] : vector<2x8x16xf32> to vector<2x16xf32>
    %19 = vector.extract_strided_slice %13 {offsets = [0, 3], sizes = [16, 16], strides = [1, 1]} : vector<16x22xf32> to vector<16x16xf32>
    %20 = arith.mulf %9, %19 : vector<16x16xf32>
    %21 = vector.shape_cast %20 : vector<16x16xf32> to vector<2x8x16xf32>
    %cst_9 = arith.constant dense<0.000000e+00> : vector<2x16xf32>
    %22 = vector.multi_reduction <add>, %21, %cst_9 [1] : vector<2x8x16xf32> to vector<2x16xf32>
    %23 = vector.extract_strided_slice %13 {offsets = [0, 6], sizes = [16, 16], strides = [1, 1]} : vector<16x22xf32> to vector<16x16xf32>
    %24 = arith.mulf %9, %23 : vector<16x16xf32>
    %25 = vector.shape_cast %24 : vector<16x16xf32> to vector<2x8x16xf32>
    %cst_10 = arith.constant dense<0.000000e+00> : vector<2x16xf32>
    %26 = vector.multi_reduction <add>, %25, %cst_10 [1] : vector<2x8x16xf32> to vector<2x16xf32>
    %27 = arith.maximumf %18, %22 : vector<2x16xf32>
    %28 = arith.maximumf %27, %26 : vector<2x16xf32>
    %cst_11 = arith.constant 0.000000e+00 : f32
    %29 = vector.broadcast %cst_11 : f32 to vector<2x16xf32>
    %cst_12 = arith.constant 0.000000e+00 : f32
    %30 = vector.broadcast %cst_12 : f32 to vector<16x16xf32>
    %31 = arith.subf %18, %28 : vector<2x16xf32>
    %32 = math.exp %31 : vector<2x16xf32>
    %33 = arith.addf %29, %32 : vector<2x16xf32>
    %34 = vector.shape_cast %32 : vector<2x16xf32> to vector<2x1x16xf32>
    %35 = vector.shape_cast %34 : vector<2x1x16xf32> to vector<2x1x16xf32>
    %36 = vector.broadcast %35 : vector<2x1x16xf32> to vector<2x8x16xf32>
    %37 = vector.shape_cast %36 : vector<2x8x16xf32> to vector<16x16xf32>
    %38 = vector.extract_strided_slice %14 {offsets = [0, 0], sizes = [16, 16], strides = [1, 1]} : vector<16x22xf32> to vector<16x16xf32>
    %39 = arith.mulf %37, %38 : vector<16x16xf32>
    %40 = arith.addf %30, %39 : vector<16x16xf32>
    %41 = arith.subf %22, %28 : vector<2x16xf32>
    %42 = math.exp %41 : vector<2x16xf32>
    %43 = arith.addf %33, %42 : vector<2x16xf32>
    %44 = vector.shape_cast %42 : vector<2x16xf32> to vector<2x1x16xf32>
    %45 = vector.shape_cast %44 : vector<2x1x16xf32> to vector<2x1x16xf32>
    %46 = vector.broadcast %45 : vector<2x1x16xf32> to vector<2x8x16xf32>
    %47 = vector.shape_cast %46 : vector<2x8x16xf32> to vector<16x16xf32>
    %48 = vector.extract_strided_slice %14 {offsets = [0, 3], sizes = [16, 16], strides = [1, 1]} : vector<16x22xf32> to vector<16x16xf32>
    %49 = arith.mulf %47, %48 : vector<16x16xf32>
    %50 = arith.addf %40, %49 : vector<16x16xf32>
    %51 = arith.subf %26, %28 : vector<2x16xf32>
    %52 = math.exp %51 : vector<2x16xf32>
    %53 = arith.addf %43, %52 : vector<2x16xf32>
    %54 = vector.shape_cast %52 : vector<2x16xf32> to vector<2x1x16xf32>
    %55 = vector.shape_cast %54 : vector<2x1x16xf32> to vector<2x1x16xf32>
    %56 = vector.broadcast %55 : vector<2x1x16xf32> to vector<2x8x16xf32>
    %57 = vector.shape_cast %56 : vector<2x8x16xf32> to vector<16x16xf32>
    %58 = vector.extract_strided_slice %14 {offsets = [0, 6], sizes = [16, 16], strides = [1, 1]} : vector<16x22xf32> to vector<16x16xf32>
    %59 = arith.mulf %57, %58 : vector<16x16xf32>
    %60 = arith.addf %50, %59 : vector<16x16xf32>
    %61 = tpu.reciprocal %53 {approx = true} : vector<2x16xf32> -> vector<2x16xf32>
    %62 = arith.mulf %53, %61 : vector<2x16xf32>
    %cst_13 = arith.constant 2.000000e+00 : f32
    %63 = vector.broadcast %cst_13 : f32 to vector<2x16xf32>
    %64 = arith.subf %63, %62 : vector<2x16xf32>
    %65 = arith.mulf %61, %64 : vector<2x16xf32>
    %66 = arith.mulf %32, %65 : vector<2x16xf32>
    %c0_14 = arith.constant 0 : index
    %c0_15 = arith.constant 0 : index
    %c0_16 = arith.constant 0 : index
    %c0_17 = arith.constant 0 : index
    %c0_18 = arith.constant 0 : index
    %67 = vector.load %arg7[%c0_14, %c0_15, %c0_16, %c0_17, %c0_18] : memref<1x2x3x2x16xf32, #tpu.memory_space<vmem>>, vector<1x1x1x2x16xf32>
    %68 = vector.shape_cast %67 : vector<1x1x1x2x16xf32> to vector<2x16xf32>
    %69 = vector.shape_cast %66 : vector<2x16xf32> to vector<1x1x1x2x16xf32>
    tpu.vector_store %arg7[%c0_14, %c0_15, %c0_16, %c0_17, %c0_18], %69 {strides = array<i32>} : memref<1x2x3x2x16xf32, #tpu.memory_space<vmem>>, vector<1x1x1x2x16xf32>,
    %70 = arith.mulf %42, %65 : vector<2x16xf32>
    %c0_19 = arith.constant 0 : index
    %c0_20 = arith.constant 0 : index
    %c1 = arith.constant 1 : index
    %c0_21 = arith.constant 0 : index
    %c0_22 = arith.constant 0 : index
    %71 = vector.load %arg7[%c0_19, %c0_20, %c1, %c0_21, %c0_22] : memref<1x2x3x2x16xf32, #tpu.memory_space<vmem>>, vector<1x1x1x2x16xf32>
    %72 = vector.shape_cast %71 : vector<1x1x1x2x16xf32> to vector<2x16xf32>
    %73 = vector.shape_cast %70 : vector<2x16xf32> to vector<1x1x1x2x16xf32>
    tpu.vector_store %arg7[%c0_19, %c0_20, %c1, %c0_21, %c0_22], %73 {strides = array<i32>} : memref<1x2x3x2x16xf32, #tpu.memory_space<vmem>>, vector<1x1x1x2x16xf32>,
    %74 = arith.mulf %52, %65 : vector<2x16xf32>
    %c0_23 = arith.constant 0 : index
    %c0_24 = arith.constant 0 : index
    %c2 = arith.constant 2 : index
    %c0_25 = arith.constant 0 : index
    %c0_26 = arith.constant 0 : index
    %75 = vector.load %arg7[%c0_23, %c0_24, %c2, %c0_25, %c0_26] : memref<1x2x3x2x16xf32, #tpu.memory_space<vmem>>, vector<1x1x1x2x16xf32>
    %76 = vector.shape_cast %75 : vector<1x1x1x2x16xf32> to vector<2x16xf32>
    %77 = vector.shape_cast %74 : vector<2x16xf32> to vector<1x1x1x2x16xf32>
    tpu.vector_store %arg7[%c0_23, %c0_24, %c2, %c0_25, %c0_26], %77 {strides = array<i32>} : memref<1x2x3x2x16xf32, #tpu.memory_space<vmem>>, vector<1x1x1x2x16xf32>,
    %78 = vector.shape_cast %65 : vector<2x16xf32> to vector<2x1x16xf32>
    %79 = vector.shape_cast %78 : vector<2x1x16xf32> to vector<2x1x16xf32>
    %80 = vector.broadcast %79 : vector<2x1x16xf32> to vector<2x8x16xf32>
    %81 = vector.shape_cast %80 : vector<2x8x16xf32> to vector<16x16xf32>
    %82 = arith.mulf %60, %81 : vector<16x16xf32>
    %83 = vector.extract_strided_slice %6 {offsets = [16, 0], sizes = [16, 16], strides = [1, 1]} : vector<32x48xf32> to vector<16x16xf32>
    %cst_27 = arith.constant 0.353553385 : f32
    %84 = vector.broadcast %cst_27 : f32 to vector<16x16xf32>
    %85 = arith.mulf %83, %84 : vector<16x16xf32>
    %86 = vector.extract_strided_slice %6 {offsets = [16, 16], sizes = [16, 16], strides = [1, 1]} : vector<32x48xf32> to vector<16x16xf32>
    %87 = vector.extract_strided_slice %6 {offsets = [16, 32], sizes = [16, 16], strides = [1, 1]} : vector<32x48xf32> to vector<16x16xf32>
    %cst_28 = arith.constant 0.000000e+00 : f32
    %88 = vector.broadcast %cst_28 : f32 to vector<16x1xf32>
    %89 = tpu.concatenate %88, %86, %88 in 1 : vector<16x1xf32>, vector<16x16xf32>, vector<16x1xf32> -> vector<16x18xf32>
    %90 = tpu.concatenate %88, %87, %88 in 1 : vector<16x1xf32>, vector<16x16xf32>, vector<16x1xf32> -> vector<16x18xf32>
    %91 = vector.extract_strided_slice %89 {offsets = [0, 0], sizes = [16, 16], strides = [1, 1]} : vector<16x18xf32> to vector<16x16xf32>
    %92 = arith.mulf %85, %91 : vector<16x16xf32>
    %93 = vector.shape_cast %92 : vector<16x16xf32> to vector<2x8x16xf32>
    %cst_29 = arith.constant dense<0.000000e+00> : vector<2x16xf32>
    %94 = vector.multi_reduction <add>, %93, %cst_29 [1] : vector<2x8x16xf32> to vector<2x16xf32>
    %95 = vector.extract_strided_slice %89 {offsets = [0, 1], sizes = [16, 16], strides = [1, 1]} : vector<16x18xf32> to vector<16x16xf32>
    %96 = arith.mulf %85, %95 : vector<16x16xf32>
    %97 = vector.shape_cast %96 : vector<16x16xf32> to vector<2x8x16xf32>
    %cst_30 = arith.constant dense<0.000000e+00> : vector<2x16xf32>
    %98 = vector.multi_reduction <add>, %97, %cst_30 [1] : vector<2x8x16xf32> to vector<2x16xf32>
    %99 = vector.extract_strided_slice %89 {offsets = [0, 2], sizes = [16, 16], strides = [1, 1]} : vector<16x18xf32> to vector<16x16xf32>
    %100 = arith.mulf %85, %99 : vector<16x16xf32>
    %101 = vector.shape_cast %100 : vector<16x16xf32> to vector<2x8x16xf32>
    %cst_31 = arith.constant dense<0.000000e+00> : vector<2x16xf32>
    %102 = vector.multi_reduction <add>, %101, %cst_31 [1] : vector<2x8x16xf32> to vector<2x16xf32>
    %103 = arith.maximumf %94, %98 : vector<2x16xf32>
    %104 = arith.maximumf %103, %102 : vector<2x16xf32>
    %cst_32 = arith.constant 0.000000e+00 : f32
    %105 = vector.broadcast %cst_32 : f32 to vector<2x16xf32>
    %cst_33 = arith.constant 0.000000e+00 : f32
    %106 = vector.broadcast %cst_33 : f32 to vector<16x16xf32>
    %107 = arith.subf %94, %104 : vector<2x16xf32>
    %108 = math.exp %107 : vector<2x16xf32>
    %109 = arith.addf %105, %108 : vector<2x16xf32>
    %110 = vector.shape_cast %108 : vector<2x16xf32> to vector<2x1x16xf32>
    %111 = vector.shape_cast %110 : vector<2x1x16xf32> to vector<2x1x16xf32>
    %112 = vector.broadcast %111 : vector<2x1x16xf32> to vector<2x8x16xf32>
    %113 = vector.shape_cast %112 : vector<2x8x16xf32> to vector<16x16xf32>
    %114 = vector.extract_strided_slice %90 {offsets = [0, 0], sizes = [16, 16], strides = [1, 1]} : vector<16x18xf32> to vector<16x16xf32>
    %115 = arith.mulf %113, %114 : vector<16x16xf32>
    %116 = arith.addf %106, %115 : vector<16x16xf32>
    %117 = arith.subf %98, %104 : vector<2x16xf32>
    %118 = math.exp %117 : vector<2x16xf32>
    %119 = arith.addf %109, %118 : vector<2x16xf32>
    %120 = vector.shape_cast %118 : vector<2x16xf32> to vector<2x1x16xf32>
    %121 = vector.shape_cast %120 : vector<2x1x16xf32> to vector<2x1x16xf32>
    %122 = vector.broadcast %121 : vector<2x1x16xf32> to vector<2x8x16xf32>
    %123 = vector.shape_cast %122 : vector<2x8x16xf32> to vector<16x16xf32>
    %124 = vector.extract_strided_slice %90 {offsets = [0, 1], sizes = [16, 16], strides = [1, 1]} : vector<16x18xf32> to vector<16x16xf32>
    %125 = arith.mulf %123, %124 : vector<16x16xf32>
    %126 = arith.addf %116, %125 : vector<16x16xf32>
    %127 = arith.subf %102, %104 : vector<2x16xf32>
    %128 = math.exp %127 : vector<2x16xf32>
    %129 = arith.addf %119, %128 : vector<2x16xf32>
    %130 = vector.shape_cast %128 : vector<2x16xf32> to vector<2x1x16xf32>
    %131 = vector.shape_cast %130 : vector<2x1x16xf32> to vector<2x1x16xf32>
    %132 = vector.broadcast %131 : vector<2x1x16xf32> to vector<2x8x16xf32>
    %133 = vector.shape_cast %132 : vector<2x8x16xf32> to vector<16x16xf32>
    %134 = vector.extract_strided_slice %90 {offsets = [0, 2], sizes = [16, 16], strides = [1, 1]} : vector<16x18xf32> to vector<16x16xf32>
    %135 = arith.mulf %133, %134 : vector<16x16xf32>
    %136 = arith.addf %126, %135 : vector<16x16xf32>
    %137 = tpu.reciprocal %129 {approx = true} : vector<2x16xf32> -> vector<2x16xf32>
    %138 = arith.mulf %129, %137 : vector<2x16xf32>
    %cst_34 = arith.constant 2.000000e+00 : f32
    %139 = vector.broadcast %cst_34 : f32 to vector<2x16xf32>
    %140 = arith.subf %139, %138 : vector<2x16xf32>
    %141 = arith.mulf %137, %140 : vector<2x16xf32>
    %142 = arith.mulf %108, %141 : vector<2x16xf32>
    %c0_35 = arith.constant 0 : index
    %c1_36 = arith.constant 1 : index
    %c0_37 = arith.constant 0 : index
    %c0_38 = arith.constant 0 : index
    %c0_39 = arith.constant 0 : index
    %143 = vector.load %arg7[%c0_35, %c1_36, %c0_37, %c0_38, %c0_39] : memref<1x2x3x2x16xf32, #tpu.memory_space<vmem>>, vector<1x1x1x2x16xf32>
    %144 = vector.shape_cast %143 : vector<1x1x1x2x16xf32> to vector<2x16xf32>
    %145 = vector.shape_cast %142 : vector<2x16xf32> to vector<1x1x1x2x16xf32>
    tpu.vector_store %arg7[%c0_35, %c1_36, %c0_37, %c0_38, %c0_39], %145 {strides = array<i32>} : memref<1x2x3x2x16xf32, #tpu.memory_space<vmem>>, vector<1x1x1x2x16xf32>,
    %146 = arith.mulf %118, %141 : vector<2x16xf32>
    %c0_40 = arith.constant 0 : index
    %c1_41 = arith.constant 1 : index
    %c1_42 = arith.constant 1 : index
    %c0_43 = arith.constant 0 : index
    %c0_44 = arith.constant 0 : index
    %147 = vector.load %arg7[%c0_40, %c1_41, %c1_42, %c0_43, %c0_44] : memref<1x2x3x2x16xf32, #tpu.memory_space<vmem>>, vector<1x1x1x2x16xf32>
    %148 = vector.shape_cast %147 : vector<1x1x1x2x16xf32> to vector<2x16xf32>
    %149 = vector.shape_cast %146 : vector<2x16xf32> to vector<1x1x1x2x16xf32>
    tpu.vector_store %arg7[%c0_40, %c1_41, %c1_42, %c0_43, %c0_44], %149 {strides = array<i32>} : memref<1x2x3x2x16xf32, #tpu.memory_space<vmem>>, vector<1x1x1x2x16xf32>,
    %150 = arith.mulf %128, %141 : vector<2x16xf32>
    %c0_45 = arith.constant 0 : index
    %c1_46 = arith.constant 1 : index
    %c2_47 = arith.constant 2 : index
    %c0_48 = arith.constant 0 : index
    %c0_49 = arith.constant 0 : index
    %151 = vector.load %arg7[%c0_45, %c1_46, %c2_47, %c0_48, %c0_49] : memref<1x2x3x2x16xf32, #tpu.memory_space<vmem>>, vector<1x1x1x2x16xf32>
    %152 = vector.shape_cast %151 : vector<1x1x1x2x16xf32> to vector<2x16xf32>
    %153 = vector.shape_cast %150 : vector<2x16xf32> to vector<1x1x1x2x16xf32>
    tpu.vector_store %arg7[%c0_45, %c1_46, %c2_47, %c0_48, %c0_49], %153 {strides = array<i32>} : memref<1x2x3x2x16xf32, #tpu.memory_space<vmem>>, vector<1x1x1x2x16xf32>,
    %154 = vector.shape_cast %141 : vector<2x16xf32> to vector<2x1x16xf32>
    %155 = vector.shape_cast %154 : vector<2x1x16xf32> to vector<2x1x16xf32>
    %156 = vector.broadcast %155 : vector<2x1x16xf32> to vector<2x8x16xf32>
    %157 = vector.shape_cast %156 : vector<2x8x16xf32> to vector<16x16xf32>
    %158 = arith.mulf %136, %157 : vector<16x16xf32>
    %159 = tpu.concatenate %82, %158 in 0 : vector<16x16xf32>, vector<16x16xf32> -> vector<32x16xf32>
    %c0_50 = arith.constant 0 : index
    %c0_51 = arith.constant 0 : index
    %160 = vector.load %arg4[%c0_50, %c0_51] : memref<32x32xf32, #tpu.memory_space<vmem>>, vector<32x32xf32>
    %cst_52 = arith.constant dense<0.000000e+00> : vector<32x16xf32>
    %161 = tpu.matmul %160, %159, %cst_52 {dimension_numbers = #tpu.dot_dimension_numbers<[1], [0], [0], [1], [0, 0, 1, 1], [], []>} : vector<32x32xf32>, vector<32x16xf32>, vector<32x16xf32> -> vector<32x16xf32>
    %c0_53 = arith.constant 0 : index
    %c0_54 = arith.constant 0 : index
    %162 = vector.load %arg5[%c0_53, %c0_54] : memref<32x1xf32, #tpu.memory_space<vmem>>, vector<32x1xf32>
    %163 = vector.broadcast %162 : vector<32x1xf32> to vector<32x16xf32>
    %164 = arith.addf %161, %163 : vector<32x16xf32>
    %c0_55 = arith.constant 0 : index
    %c0_56 = arith.constant 0 : index
    %c0_57 = arith.constant 0 : index
    %165 = vector.load %arg6[%c0_55, %c0_56, %c0_57] : memref<1x32x16xf32, #tpu.memory_space<vmem>>, vector<1x32x16xf32>
    %166 = vector.shape_cast %165 : vector<1x32x16xf32> to vector<32x16xf32>
    %167 = vector.shape_cast %164 : vector<32x16xf32> to vector<1x32x16xf32>
    tpu.vector_store %arg6[%c0_55, %c0_56, %c0_57], %167 {strides = array<i32>} : memref<1x32x16xf32, #tpu.memory_space<vmem>>, vector<1x32x16xf32>,
    return
  }
  func.func @transform_0(%arg0: i32) -> (i32, i32, i32) {
    %c0_i32 = arith.constant 0 : i32
    %c0_i32_0 = arith.constant 0 : i32
    %c0_i32_1 = arith.constant 0 : i32
    return %arg0, %c0_i32, %c0_i32_0 : i32, i32, i32
  }
  func.func @transform_1(%arg0: i32) -> (i32, i32) {
    %c0_i32 = arith.constant 0 : i32
    %c0_i32_0 = arith.constant 0 : i32
    %c0_i32_1 = arith.constant 0 : i32
    return %c0_i32, %c0_i32_0 : i32, i32
  }
  func.func @transform_2(%arg0: i32) -> (i32, i32) {
    %c0_i32 = arith.constant 0 : i32
    %c0_i32_0 = arith.constant 0 : i32
    %c0_i32_1 = arith.constant 0 : i32
    return %c0_i32, %c0_i32_0 : i32, i32
  }
  func.func @transform_3(%arg0: i32) -> (i32, i32) {
    %c0_i32 = arith.constant 0 : i32
    %c0_i32_0 = arith.constant 0 : i32
    %c0_i32_1 = arith.constant 0 : i32
    return %c0_i32, %c0_i32_0 : i32, i32
  }
  func.func @transform_4(%arg0: i32) -> (i32, i32) {
    %c0_i32 = arith.constant 0 : i32
    %c0_i32_0 = arith.constant 0 : i32
    %c0_i32_1 = arith.constant 0 : i32
    return %c0_i32, %c0_i32_0 : i32, i32
  }
  func.func @transform_5(%arg0: i32) -> (i32, i32, i32) {
    %c0_i32 = arith.constant 0 : i32
    %c0_i32_0 = arith.constant 0 : i32
    %c0_i32_1 = arith.constant 0 : i32
    return %arg0, %c0_i32, %c0_i32_0 : i32, i32, i32
  }
  func.func @transform_6(%arg0: i32) -> (i32, i32, i32, i32, i32) {
    %c0_i32 = arith.constant 0 : i32
    %c0_i32_0 = arith.constant 0 : i32
    %c0_i32_1 = arith.constant 0 : i32
    %c0_i32_2 = arith.constant 0 : i32
    %c0_i32_3 = arith.constant 0 : i32
    return %arg0, %c0_i32, %c0_i32_0, %c0_i32_1, %c0_i32_2 : i32, i32, i32, i32, i32
  }
}

</mosaic_0001>

<llo_original>
// kernel: tpu_custom_call.1
$region0: #{tpu_custom_call.1}
  #allocation0 [shape = 'u32[]', space=smem, size = 0x4, offset = 0x4, fixed_abs, tag = 'smem constant byte address 0x4 - core index']
  #allocation1 [shape = 'u32[144,128]{1,0:T(1,128)}', space=vmem, size = 0x12000, scoped, tag = 'internal scratch']
  %s0 = inlined_call_operand.vmem [shape: f32[2,32,48], index: 0, kind: input, shape index: {}]
  %s1 = inlined_call_operand.hbm [shape: f32[32,32], index: 1, kind: input, shape index: {}]
  %s2 = inlined_call_operand.vmem [shape: f32[32,1], index: 2, kind: input, shape index: {}]
  %s3 = inlined_call_operand.hbm [shape: f32[32,32], index: 3, kind: input, shape index: {}]
  %s4 = inlined_call_operand.vmem [shape: f32[32,1], index: 4, kind: input, shape index: {}]
  %s5 = inlined_call_operand.vmem [shape: f32[2,32,16], index: 5, kind: output, shape index: {0}]
  %s6 = inlined_call_operand.hbm [shape: f32[2,2,3,2,16], index: 6, kind: output, shape index: {1}]
  %7 = xla_tuple %s5, %s6
  %s8 = sld [smem:[#allocation0]]
  $region69: #{tpu_custom_call.1} parent=0
    _
  %s10 = ssub.s32 1, %s8
  %s11 = scalar_select 0, %s10, %s8
  $region1: #{tpu_custom_call.1} parent=0
    #allocation2 [shape = 'u8[16384]{0}', space=vmem, size = 0x4000, scoped, tag = 'input window, operand 1, single buffered']
    #allocation3 [shape = 's32[2]{0}', space=sflag, size = 0x8, scoped, tag = 'scoped memory for tpu_custom_call.1']
    #allocation4 [shape = 's32[2]{0}', space=sflag, size = 0x8, scoped, tag = 'scoped memory for tpu_custom_call.1']
    #allocation5 [shape = 'u8[16384]{0}', space=vmem, size = 0x4000, scoped, tag = 'input window, operand 3, single buffered']
    #allocation6 [shape = 's32[1]{0}', space=sflag, size = 0x4, scoped, tag = 'scoped memory for tpu_custom_call.1']
    #allocation7 [shape = 'u8[12288]{0}', space=vmem, size = 0x3000, scoped, tag = 'output window, operand 1']
    %12 = vsyncpa [#allocation3], 0
    %13 = vsyncpa [#allocation6], 0
    %14 = vsyncpa [#allocation4], 0
    %s15 = scalar_lea.sflag [#allocation4], 1
    %16 = vsyncpa %s15, 0
    loop: start=0, step=1, limit=4
    $region2: #{tpu_custom_call.1} parent=1 // loop_pre_header
      _
    $region3: #{tpu_custom_call.1} parent=1 // loop_header
      %s18 = sphi 0, %s22
      %p19 = scmp.ge.s32.totalorder %s18, 4
      %s28 = sphi 0, %s30
      %s31 = sphi 0, %s28
      %s32 = sphi 0, %s31
      %s48 = sphi 0, %s32
      %s52 = sphi 0, %s52
      %s54 = sphi 0, %s52
      %s55 = sphi 0, %s54
      %s69 = sphi 0, %s55
      %s73 = sphi 0, %s73
      %s75 = sphi 0, %s73
      %s76 = sphi 0, %s75
      %s90 = sphi 0, %s76
      %s94 = sphi 0, %s94
      %s96 = sphi 0, %s94
      %s97 = sphi 0, %s96
      %s111 = sphi 0, %s97
      %s115 = sphi 0, %s115
      %s117 = sphi 0, %s115
      %s118 = sphi 0, %s117
      %s132 = sphi 0, %s118
      %s138 = sphi 0, %s140
      %s141 = sphi 0, %s138
      %s142 = sphi 0, %s141
      %s158 = sphi 0, %s142
      %s164 = sphi 0, %s166
      %s167 = sphi 0, %s164
      %s168 = sphi 0, %s167
      %s184 = sphi 0, %s168
    $region4: #{tpu_custom_call.1} parent=1 // loop_header_branch
      %21 = sbr.rel (%p19) target = $region8
    $region5: #{tpu_custom_call.1} parent=1 // loop_body
      %s23 = ssub.s32 %s18, 1
      %s24 = ssub.s32 %s18, 2
      %s25 = sadd.s32 %s18, 1
      %s26 = ssub.s32 %s18, %s25
      %p27 = scmp.eq.s32.totalorder %s26, 0
      %s29 = sadd.s32 %s28, 1
      %s30 = scalar_select %p27, %s28, %s29
      %p33 = pneg %p27
      %p34 = scmp.eq.s32.totalorder %s18, 1
      %p35 = por %p33, %p34
      %p36 = scmp.ne.s32.totalorder %s28, %s31
      %p37 = scmp.eq.s32.totalorder %s18, 0
      %p38 = por %p36, %p37
      %p39 = scmp.ne.s32.totalorder %s28, %s31
      %p40 = scmp.eq.s32.totalorder %s23, 1
      %p41 = por %p39, %p40
      %p42 = scmp.ne.s32.totalorder %s31, %s32
      %p43 = scmp.eq.s32.totalorder %s23, 0
      %p44 = por %p42, %p43
      %p45 = scmp.ne.s32.totalorder %s31, %s32
      %p46 = scmp.eq.s32.totalorder %s24, 1
      %p47 = por %p45, %p46
      %p49 = scmp.ne.s32.totalorder %s32, %s48
      %p50 = scmp.eq.s32.totalorder %s24, 0
      %p51 = por %p49, %p50
      %s53 = sadd.s32 %s52, 1
      %p56 = scmp.eq.s32.totalorder %s18, 1
      %p57 = scmp.ne.s32.totalorder %s52, %s54
      %p58 = scmp.eq.s32.totalorder %s18, 0
      %p59 = por %p57, %p58
      %p60 = scmp.ne.s32.totalorder %s52, %s54
      %p61 = scmp.eq.s32.totalorder %s23, 1
      %p62 = por %p60, %p61
      %p63 = scmp.ne.s32.totalorder %s54, %s55
      %p64 = scmp.eq.s32.totalorder %s23, 0
      %p65 = por %p63, %p64
      %p66 = scmp.ne.s32.totalorder %s54, %s55
      %p67 = scmp.eq.s32.totalorder %s24, 1
      %p68 = por %p66, %p67
      %p70 = scmp.ne.s32.totalorder %s55, %s69
      %p71 = scmp.eq.s32.totalorder %s24, 0
      %p72 = por %p70, %p71
      %s74 = sadd.s32 %s73, 1
      %p77 = scmp.eq.s32.totalorder %s18, 1
      %p78 = scmp.ne.s32.totalorder %s73, %s75
      %p79 = scmp.eq.s32.totalorder %s18, 0
      %p80 = por %p78, %p79
      %p81 = scmp.ne.s32.totalorder %s73, %s75
      %p82 = scmp.eq.s32.totalorder %s23, 1
      %p83 = por %p81, %p82
      %p84 = scmp.ne.s32.totalorder %s75, %s76
      %p85 = scmp.eq.s32.totalorder %s23, 0
      %p86 = por %p84, %p85
      %p87 = scmp.ne.s32.totalorder %s75, %s76
      %p88 = scmp.eq.s32.totalorder %s24, 1
      %p89 = por %p87, %p88
      %p91 = scmp.ne.s32.totalorder %s76, %s90
      %p92 = scmp.eq.s32.totalorder %s24, 0
      %p93 = por %p91, %p92
      %s95 = sadd.s32 %s94, 1
      %p98 = scmp.eq.s32.totalorder %s18, 1
      %p99 = scmp.ne.s32.totalorder %s94, %s96
      %p100 = scmp.eq.s32.totalorder %s18, 0
      %p101 = por %p99, %p100
      %p102 = scmp.ne.s32.totalorder %s94, %s96
      %p103 = scmp.eq.s32.totalorder %s23, 1
      %p104 = por %p102, %p103
      %p105 = scmp.ne.s32.totalorder %s96, %s97
      %p106 = scmp.eq.s32.totalorder %s23, 0
      %p107 = por %p105, %p106
      %p108 = scmp.ne.s32.totalorder %s96, %s97
      %p109 = scmp.eq.s32.totalorder %s24, 1
      %p110 = por %p108, %p109
      %p112 = scmp.ne.s32.totalorder %s97, %s111
      %p113 = scmp.eq.s32.totalorder %s24, 0
      %p114 = por %p112, %p113
      %s116 = sadd.s32 %s115, 1
      %p119 = scmp.eq.s32.totalorder %s18, 1
      %p120 = scmp.ne.s32.totalorder %s115, %s117
      %p121 = scmp.eq.s32.totalorder %s18, 0
      %p122 = por %p120, %p121
      %p123 = scmp.ne.s32.totalorder %s115, %s117
      %p124 = scmp.eq.s32.totalorder %s23, 1
      %p125 = por %p123, %p124
      %p126 = scmp.ne.s32.totalorder %s117, %s118
      %p127 = scmp.eq.s32.totalorder %s23, 0
      %p128 = por %p126, %p127
      %p129 = scmp.ne.s32.totalorder %s117, %s118
      %p130 = scmp.eq.s32.totalorder %s24, 1
      %p131 = por %p129, %p130
      %p133 = scmp.ne.s32.totalorder %s118, %s132
      %p134 = scmp.eq.s32.totalorder %s24, 0
      %p135 = por %p133, %p134
      %s136 = ssub.s32 %s18, %s25
      %p137 = scmp.eq.s32.totalorder %s136, 0
      %s139 = sadd.s32 %s138, 1
      %s140 = scalar_select %p137, %s138, %s139
      %p143 = pneg %p137
      %p144 = scmp.eq.s32.totalorder %s18, 1
      %p145 = por %p143, %p144
      %p146 = scmp.ne.s32.totalorder %s138, %s141
      %p147 = scmp.eq.s32.totalorder %s18, 0
      %p148 = por %p146, %p147
      %p149 = scmp.ne.s32.totalorder %s138, %s141
      %p150 = scmp.eq.s32.totalorder %s23, 1
      %p151 = por %p149, %p150
      %p152 = scmp.ne.s32.totalorder %s141, %s142
      %p153 = scmp.eq.s32.totalorder %s23, 0
      %p154 = por %p152, %p153
      %p155 = scmp.ne.s32.totalorder %s141, %s142
      %p156 = scmp.eq.s32.totalorder %s24, 1
      %p157 = por %p155, %p156
      %p159 = scmp.ne.s32.totalorder %s142, %s158
      %p160 = scmp.eq.s32.totalorder %s24, 0
      %p161 = por %p159, %p160
      %s162 = ssub.s32 %s18, %s25
      %p163 = scmp.eq.s32.totalorder %s162, 0
      %s165 = sadd.s32 %s164, 1
      %s166 = scalar_select %p163, %s164, %s165
      %p169 = pneg %p163
      %p170 = scmp.eq.s32.totalorder %s18, 1
      %p171 = por %p169, %p170
      %p172 = scmp.ne.s32.totalorder %s164, %s167
      %p173 = scmp.eq.s32.totalorder %s18, 0
      %p174 = por %p172, %p173
      %p175 = scmp.ne.s32.totalorder %s164, %s167
      %p176 = scmp.eq.s32.totalorder %s23, 1
      %p177 = por %p175, %p176
      %p178 = scmp.ne.s32.totalorder %s167, %s168
      %p179 = scmp.eq.s32.totalorder %s23, 0
      %p180 = por %p178, %p179
      %p181 = scmp.ne.s32.totalorder %s167, %s168
      %p182 = scmp.eq.s32.totalorder %s24, 1
      %p183 = por %p181, %p182
      %p185 = scmp.ne.s32.totalorder %s168, %s184
      %p186 = scmp.eq.s32.totalorder %s24, 0
      %p187 = por %p185, %p186
      %p188 = scmp.le.s32.totalorder 1, %s18
      %p189 = scmp.lt.s32.totalorder %s18, 3
      %p190 = pnand %p188, %p189
      %p191 = pneg %p190
      // Predicated region
      $region9: #{tpu_custom_call.1} parent=5 // pred_check
        _
      $region10: #{tpu_custom_call.1} parent=5 // pred_check_branch
        %193 = sbr.rel (%p190) target = $region12
      $region11: #{tpu_custom_call.1} parent=5 // pred_region
        %s194 = ssub.s32 %s18, 1
        // Predicated region
        $region13: #{tpu_custom_call.1} parent=11 // pred_check
          %p195 = pneg %p65
        $region14: #{tpu_custom_call.1} parent=11 // pred_check_branch
          %197 = sbr.rel (%p195) target = $region16
        $region15: #{tpu_custom_call.1} parent=11 // pred_region
          %s199 = ssub.s32 512, 512
          %200 = vsyncadd [#allocation3], %s199
          %s201 = sshll.u32 [#allocation2], 4
          %s202 = int_to_ptr.vmem [resolvable:$true] %s201
          %207 = dma.hbm_to_vmem [thread:$0]  %s1, 512, %s202, [#allocation3], 128, 128, 8
        $region16: #{tpu_custom_call.1} parent=11 // pred_fallthru
          _
        // Predicated region
        $region17: #{tpu_custom_call.1} parent=11 // pred_check
          %p208 = pneg %p86
        $region18: #{tpu_custom_call.1} parent=11 // pred_check_branch
          %210 = sbr.rel (%p208) target = $region20
        $region19: #{tpu_custom_call.1} parent=11 // pred_region
          _
        $region20: #{tpu_custom_call.1} parent=11 // pred_fallthru
          _
        // Predicated region
        $region21: #{tpu_custom_call.1} parent=11 // pred_check
          %p211 = pneg %p107
        $region22: #{tpu_custom_call.1} parent=11 // pred_check_branch
          %213 = sbr.rel (%p211) target = $region24
        $region23: #{tpu_custom_call.1} parent=11 // pred_region
          %s215 = ssub.s32 512, 512
          %216 = vsyncadd [#allocation6], %s215
          %s217 = sshll.u32 [#allocation5], 4
          %s218 = int_to_ptr.vmem [resolvable:$true] %s217
          %223 = dma.hbm_to_vmem [thread:$0]  %s3, 512, %s218, [#allocation6], 128, 128, 8
        $region24: #{tpu_custom_call.1} parent=11 // pred_fallthru
          _
        // Predicated region
        $region25: #{tpu_custom_call.1} parent=11 // pred_check
          %p224 = pneg %p128
        $region26: #{tpu_custom_call.1} parent=11 // pred_check_branch
          %226 = sbr.rel (%p224) target = $region28
        $region27: #{tpu_custom_call.1} parent=11 // pred_region
          _
        $region28: #{tpu_custom_call.1} parent=11 // pred_fallthru
          _
      $region12: #{tpu_custom_call.1} parent=5 // pred_fallthru
        _
      %p227 = scmp.lt.s32.totalorder %s18, 2
      // Predicated region
      $region29: #{tpu_custom_call.1} parent=5 // pred_check
        %p228 = pneg %p227
      $region30: #{tpu_custom_call.1} parent=5 // pred_check_branch
        %230 = sbr.rel (%p228) target = $region32
      $region31: #{tpu_custom_call.1} parent=5 // pred_region
        // Predicated region
        $region33: #{tpu_custom_call.1} parent=31 // pred_check
          %p231 = pneg %p38
        $region34: #{tpu_custom_call.1} parent=31 // pred_check_branch
          %233 = sbr.rel (%p231) target = $region36
        $region35: #{tpu_custom_call.1} parent=31 // pred_region
          %p234 = scmp.lt.s32.totalorder %s18, 1
          %s235 = scalar_select %p234, %s18, 1
          %s236 = smul.addr %s235, 4
          %s237 = smul.addr %s236, 8
          %s238 = scalar_lea.vmem %s0, %s237
        $region36: #{tpu_custom_call.1} parent=31 // pred_fallthru
          _
      $region32: #{tpu_custom_call.1} parent=5 // pred_fallthru
        _
      %p239 = scmp.le.s32.totalorder 1, %s18
      %p240 = scmp.lt.s32.totalorder %s18, 3
      %p241 = pnand %p239, %p240
      %p242 = pneg %p241
      // Predicated region
      $region37: #{tpu_custom_call.1} parent=5 // pred_check
        _
      $region38: #{tpu_custom_call.1} parent=5 // pred_check_branch
        %244 = sbr.rel (%p241) target = $region40
      $region39: #{tpu_custom_call.1} parent=5 // pred_region
        %s245 = ssub.s32 %s18, 1
        // Predicated region
        $region41: #{tpu_custom_call.1} parent=39 // pred_check
          %p246 = pneg %p65
        $region42: #{tpu_custom_call.1} parent=39 // pred_check_branch
          %248 = sbr.rel (%p246) target = $region44
        $region43: #{tpu_custom_call.1} parent=39 // pred_region
          %249 = dma.done [#allocation3], 512
        $region44: #{tpu_custom_call.1} parent=39 // pred_fallthru
          _
        // Predicated region
        $region45: #{tpu_custom_call.1} parent=39 // pred_check
          %p250 = pneg %p107
        $region46: #{tpu_custom_call.1} parent=39 // pred_check_branch
          %252 = sbr.rel (%p250) target = $region48
        $region47: #{tpu_custom_call.1} parent=39 // pred_region
          %253 = dma.done [#allocation6], 512
        $region48: #{tpu_custom_call.1} parent=39 // pred_fallthru
          _
        %p254 = scmp.lt.s32.totalorder %s23, 1
        %s255 = scalar_select %p254, %s23, 1
        %s256 = smul.addr %s255, 4
        %s257 = smul.addr %s256, 8
        %s258 = scalar_lea.vmem %s0, %s257
        %p259 = pneg %p44
        %p260 = pneg %p41
        %p261 = pneg %p65
        %p262 = pneg %p62
        %p263 = pneg %p86
        %p264 = pneg %p83
        %p265 = pneg %p107
        %p266 = pneg %p104
        %p267 = pneg %p128
        %p268 = pneg %p125
        %p269 = pneg %p154
        %p270 = pneg %p151
        %p271 = scmp.lt.s32.totalorder %s23, 1
        %s272 = scalar_select %p271, %s23, 1
        %s273 = smul.addr %s272, 4
        %s274 = smul.addr %s273, 8
        %s275 = scalar_lea.vmem %s5, %s274
        %p276 = pneg %p180
        %p277 = pneg %p177
        %s278 = sand.u32 %s167, 1
        %s279 = scalar_lea.sflag [#allocation4], %s278
        %s280 = sand.u32 %s167, 1
        %s281 = smul.addr %s280, 12
        %s282 = scalar_lea.vmem [#allocation7], %s281
        %p283 = scmp.lt.s32.totalorder %s23, 1
        %s284 = scalar_select %p283, %s23, 1
        %s285 = smul.addr %s284, 4
        %s286 = smul.addr %s285, 8
        %s287 = scalar_lea.vmem %s0, %s286
        %p288 = scmp.lt.s32.totalorder %s23, 1
        %s289 = scalar_select %p288, %s23, 1
        %s290 = smul.addr %s289, 4
        %s291 = smul.addr %s290, 8
        %s292 = scalar_lea.vmem %s5, %s291
        %v293 = vld [vmem:[%s287] sm:$0xff]
        %v294 = vld [vmem:[%s287 + $0x8] sm:$0xff]
        %v295 = vld [vmem:[%s287 + $0x10] sm:$0xff]
        %v296 = vld [vmem:[%s287 + $0x18] sm:$0xff]
        %v297 = vld [vmem:[#allocation2] sm:$0xff]
        %v298 = vld [vmem:[#allocation2 + $0x8] sm:$0xff]
        %v299 = vld [vmem:[#allocation2 + $0x10] sm:$0xff]
        %v300 = vld [vmem:[#allocation2 + $0x18] sm:$0xff]
        %v301 = vld [vmem:[%s2] sm:$0xff]
        %v302 = vld [vmem:[%s2 + $0x8] sm:$0xff]
        %v303 = vld [vmem:[%s2 + $0x10] sm:$0xff]
        %v304 = vld [vmem:[%s2 + $0x18] sm:$0xff]
        %306 = vset.pattern.permute.xlu0 0
        %307 = vperm.xlu0 %306, %v301
        %v308 = vpop.permute.xlu0 %307
        %311 = vset.pattern.permute.xlu0 0
        %312 = vperm.xlu0 %311, %v302
        %v313 = vpop.permute.xlu0 %312
        %316 = vset.pattern.permute.xlu0 0
        %317 = vperm.xlu0 %316, %v303
        %v318 = vpop.permute.xlu0 %317
        %321 = vset.pattern.permute.xlu0 0
        %322 = vperm.xlu0 %321, %v304
        %v323 = vpop.permute.xlu0 %322
        %vm325 = vcmask 261120
        %v327 = vsel %vm325, %v297, 0
        %v330 = vsel %vm325, %v298, 0
        %v333 = vsel %vm325, %v299, 0
        %v336 = vsel %vm325, %v300, 0
        %338 = vmatprep.subr.mxu0 0.0
        %339 = vmatpush1.msra.mxu0 %v293
        %340 = vmatprep.subr.mxu0 0.0
        %341 = vmatpush1.msra.mxu0 %v294
        %342 = vmatprep.subr.mxu0 0.0
        %343 = vmatpush1.msra.mxu0 %v295
        %344 = vmatprep.subr.mxu0 0.0
        %345 = vmatpush1.msra.mxu0 %v296
        %346 = vmatprep.subr.mxu0 0.0
        %347 = vmatpush1.msra.mxu0 0.0
        %348 = vmatprep.subr.mxu0 0.0
        %349 = vmatpush1.msra.mxu0 0.0
        %350 = vmatprep.subr.mxu0 0.0
        %351 = vmatpush1.msra.mxu0 0.0
        %352 = vmatprep.subr.mxu0 0.0
        %353 = vmatpush1.msra.mxu0 0.0
        %354 = vmatprep.subr.mxu0 0.0
        %355 = vmatpush1.msra.mxu0 0.0
        %356 = vmatprep.subr.mxu0 0.0
        %357 = vmatpush1.msra.mxu0 0.0
        %358 = vmatprep.subr.mxu0 0.0
        %359 = vmatpush1.msra.mxu0 0.0
        %360 = vmatprep.subr.mxu0 0.0
        %361 = vmatpush1.msra.mxu0 0.0
        %362 = vmatprep.subr.mxu0 0.0
        %363 = vmatpush1.msra.mxu0 0.0
        %364 = vmatprep.subr.mxu0 0.0
        %365 = vmatpush1.msra.mxu0 0.0
        %366 = vmatprep.subr.mxu0 0.0
        %367 = vmatpush1.msra.mxu0 0.0
        %368 = vmatprep.subr.mxu0 0.0
        %369 = vmatpush1.msra.mxu0 0.0
        %370 = vmatprep.subr.mxu0 0.0
        %371 = vmatpush1.msra.mxu0 0.0
        %372 = vmatprep.subr.mxu0 0.0
        %373 = vmatpush1.msra.mxu0 0.0
        %374 = vmatprep.subr.mxu0 0.0
        %375 = vmatpush1.msra.mxu0 0.0
        %376 = vmatprep.subr.mxu0 0.0
        %377 = vmatpush1.msra.mxu0 0.0
        %378 = vmatprep.subr.mxu0 0.0
        %379 = vmatpush1.msra.mxu0 0.0
        %380 = vmatprep.subr.mxu0 0.0
        %381 = vmatpush1.msra.mxu0 0.0
        %382 = vmatprep.subr.mxu0 0.0
        %383 = vmatpush1.msra.mxu0 0.0
        %384 = vmatprep.subr.mxu0 0.0
        %385 = vmatpush1.msra.mxu0 0.0
        %386 = vmatprep.subr.mxu0 0.0
        %387 = vmatpush1.msra.mxu0 0.0
        %388 = vmatprep.subr.mxu0 0.0
        %389 = vmatpush1.msra.mxu0 0.0
        %390 = vmatprep.subr.mxu0 0.0
        %391 = vmatpush1.msra.mxu0 0.0
        %392 = vmatprep.subr.mxu0 0.0
        %393 = vmatpush1.msra.mxu0 0.0
        %394 = vmatprep.subr.mxu0 0.0
        %395 = vmatpush1.msra.mxu0 0.0
        %396 = vmatprep.subr.mxu0 0.0
        %397 = vmatpush1.msra.mxu0 0.0
        %398 = vmatprep.subr.mxu0 0.0
        %399 = vmatpush1.msra.mxu0 0.0
        %400 = vmatprep.subr.mxu0 0.0
        %401 = vmatpush1.msra.mxu0 0.0
        %402 = vmatprep.mubr.f32.mxu0 0.0
        %403 = vmatmul.mubr.f32.gmra.mrb[0].mxu0 %v327
        %v404 = vpop.f32.mrb[0].mxu0
        %v405 = vadd.f32 %v308, %v404
        %v406 = vpop.f32.mrb[0].mxu0
        %407 = vmatprep.mubr.f32.mxu0 0.0
        %408 = vmatmul.mubr.f32.gmra.mrb[0].mxu0 %v330
        %v409 = vpop.f32.mrb[0].mxu0
        %v410 = vadd.f32 %v313, %v409
        %v411 = vpop.f32.mrb[0].mxu0
        %412 = vmatprep.mubr.f32.mxu0 0.0
        %413 = vmatmul.mubr.f32.gmra.mrb[0].mxu0 %v333
        %v414 = vpop.f32.mrb[0].mxu0
        %v415 = vadd.f32 %v318, %v414
        %v416 = vpop.f32.mrb[0].mxu0
        %417 = vmatprep.mubr.f32.mxu0 0.0
        %418 = vmatmul.mubr.f32.gmra.mrb[0].mxu0 %v336
        %v419 = vpop.f32.mrb[0].mxu0
        %v420 = vadd.f32 %v323, %v419
        %v421 = vpop.f32.mrb[0].mxu0
        %422 = vdwg.mxu0
        %v423 = vmul.f32 %v405, 0.35355338
        %v424 = vmul.f32 %v410, 0.35355338
        %427 = vrot.lane.b32.xlu0 %v405, 115
        %v428 = vpop.permute.xlu0 %427
        %429 = vrot.lane.b32.xlu0 %v410, 115
        %v430 = vpop.permute.xlu0 %429
        %vm433 = vcmask 23552
        %v434 = vsel %vm433, 0.0, %v428
        %v435 = vsel %vm433, 0.0, %v430
        %vm436 = vcmask 154624
        %v437 = vsel %vm436, %v434, 0.0
        %v438 = vsel %vm436, %v435, 0.0
        %439 = vrot.lane.b32.xlu0 %v405, 99
        %v440 = vpop.permute.xlu0 %439
        %441 = vrot.lane.b32.xlu0 %v410, 99
        %v442 = vpop.permute.xlu0 %441
        %v445 = vsel %vm433, 0.0, %v440
        %v446 = vsel %vm433, 0.0, %v442
        %v447 = vsel %vm436, %v445, 0.0
        %v448 = vsel %vm436, %v446, 0.0
        %v449 = vmul.f32 %v423, %v437
        %v450 = vmul.f32 %v424, %v438
        %vm451 = vcmask 130048
        %v452 = vsel %vm451, %v449, 0.0
        %v453 = vrot.slane %v452, 4
        %v454 = vadd.f32 %v452, %v453
        %v455 = vrot.slane %v454, 2
        %v456 = vadd.f32 %v454, %v455
        %v457 = vrot.slane %v456, 1
        %v458 = vadd.f32 %v456, %v457
        %v459 = vsel %vm451, %v450, 0.0
        %v460 = vrot.slane %v459, 4
        %v461 = vadd.f32 %v459, %v460
        %v462 = vrot.slane %v461, 2
        %v463 = vadd.f32 %v461, %v462
        %v464 = vrot.slane %v463, 1
        %v465 = vadd.f32 %v463, %v464
        %468 = vrot.lane.b32.xlu0 %v437, 125
        %v469 = vpop.permute.xlu0 %468
        %470 = vrot.lane.b32.xlu0 %v438, 125
        %v471 = vpop.permute.xlu0 %470
        %v474 = vmul.f32 %v423, %v469
        %v475 = vmul.f32 %v424, %v471
        %v476 = vsel %vm451, %v474, 0.0
        %v477 = vrot.slane %v476, 4
        %v478 = vadd.f32 %v476, %v477
        %v479 = vrot.slane %v478, 2
        %v480 = vadd.f32 %v478, %v479
        %v481 = vrot.slane %v480, 1
        %v482 = vadd.f32 %v480, %v481
        %v483 = vsel %vm451, %v475, 0.0
        %v484 = vrot.slane %v483, 4
        %v485 = vadd.f32 %v483, %v484
        %v486 = vrot.slane %v485, 2
        %v487 = vadd.f32 %v485, %v486
        %v488 = vrot.slane %v487, 1
        %v489 = vadd.f32 %v487, %v488
        %490 = vrot.lane.b32.xlu0 %v437, 122
        %v491 = vpop.permute.xlu0 %490
        %492 = vrot.lane.b32.xlu0 %v438, 122
        %v493 = vpop.permute.xlu0 %492
        %v496 = vmul.f32 %v423, %v491
        %v497 = vmul.f32 %v424, %v493
        %v498 = vsel %vm451, %v496, 0.0
        %v499 = vrot.slane %v498, 4
        %v500 = vadd.f32 %v498, %v499
        %v501 = vrot.slane %v500, 2
        %v502 = vadd.f32 %v500, %v501
        %v503 = vrot.slane %v502, 1
        %v504 = vadd.f32 %v502, %v503
        %v505 = vsel %vm451, %v497, 0.0
        %v506 = vrot.slane %v505, 4
        %v507 = vadd.f32 %v505, %v506
        %v508 = vrot.slane %v507, 2
        %v509 = vadd.f32 %v507, %v508
        %v510 = vrot.slane %v509, 1
        %v511 = vadd.f32 %v509, %v510
        %v512 = vmax.f32 %v458, %v482
        %v513 = vmax.f32 %v465, %v489
        %v514 = vmax.f32 %v512, %v504
        %v515 = vmax.f32 %v513, %v511
        %v516 = vsub.f32 %v458, %v514
        %v517 = vsub.f32 %v465, %v515
        %v518 = vmul.f32 %v516, 1.442695
        %v519 = vpow.pop %v518
        %v520 = vmul.f32 %v517, 1.442695
        %v521 = vpow.pop %v520
        %v522 = vadd.f32 %v519, 0.0
        %v523 = vadd.f32 %v521, 0.0
        %v524 = vmul.f32 %v519, %v447
        %v525 = vmul.f32 %v521, %v448
        %v526 = vadd.f32 %v524, 0.0
        %v527 = vadd.f32 %v525, 0.0
        %v528 = vsub.f32 %v482, %v514
        %v529 = vsub.f32 %v489, %v515
        %v530 = vmul.f32 %v528, 1.442695
        %v531 = vpow.pop %v530
        %v532 = vmul.f32 %v529, 1.442695
        %v533 = vpow.pop %v532
        %v534 = vadd.f32 %v522, %v531
        %v535 = vadd.f32 %v523, %v533
        %538 = vrot.lane.b32.xlu0 %v447, 125
        %v539 = vpop.permute.xlu0 %538
        %540 = vrot.lane.b32.xlu0 %v448, 125
        %v541 = vpop.permute.xlu0 %540
        %v544 = vmul.f32 %v531, %v539
        %v545 = vmul.f32 %v533, %v541
        %v546 = vadd.f32 %v526, %v544
        %v547 = vadd.f32 %v527, %v545
        %v548 = vsub.f32 %v504, %v514
        %v549 = vsub.f32 %v511, %v515
        %v550 = vmul.f32 %v548, 1.442695
        %v551 = vpow.pop %v550
        %v552 = vmul.f32 %v549, 1.442695
        %v553 = vpow.pop %v552
        %v554 = vadd.f32 %v534, %v551
        %v555 = vadd.f32 %v535, %v553
        %556 = vrot.lane.b32.xlu0 %v447, 122
        %v557 = vpop.permute.xlu0 %556
        %558 = vrot.lane.b32.xlu0 %v448, 122
        %v559 = vpop.permute.xlu0 %558
        %v562 = vmul.f32 %v551, %v557
        %v563 = vmul.f32 %v553, %v559
        %v564 = vadd.f32 %v546, %v562
        %v565 = vadd.f32 %v547, %v563
        %v566 = vrcp.pop %v554
        %v567 = vrcp.pop %v555
        %v568 = vmul.f32 %v554, %v566
        %v569 = vmul.f32 %v555, %v567
        %v570 = vsub.f32 2.0, %v568
        %v571 = vsub.f32 2.0, %v569
        %v572 = vmul.f32 %v566, %v570
        %v573 = vmul.f32 %v567, %v571
        %v574 = vmul.f32 %v519, %v572
        %v575 = vmul.f32 %v521, %v573
        %vm578 = vcmask 1041409
        %v579 = vsel %vm578, %v575, %v574
        %vm581 = vcmask 123904
        %582 = vst.msk [vmem:[%s282] sm:$0x3] %vm581, %v579
        %v583 = vmul.f32 %v531, %v572
        %v584 = vmul.f32 %v533, %v573
        %v587 = vsel %vm578, %v584, %v583
        %s589 = scalar_lea.vmem %s282, 2 [#allocation7]
        %590 = vst.msk [vmem:[%s589] sm:$0x3] %vm581, %v587
        %v591 = vmul.f32 %v551, %v572
        %v592 = vmul.f32 %v553, %v573
        %v595 = vsel %vm578, %v592, %v591
        %s597 = scalar_lea.vmem %s282, 4 [#allocation7]
        %598 = vst.msk [vmem:[%s597] sm:$0x3] %vm581, %v595
        %v599 = vmul.f32 %v564, %v572
        %v600 = vmul.f32 %v565, %v573
        %v601 = vmul.f32 %v415, 0.35355338
        %v602 = vmul.f32 %v420, 0.35355338
        %605 = vrot.lane.b32.xlu0 %v415, 113
        %v606 = vpop.permute.xlu0 %605
        %607 = vrot.lane.b32.xlu0 %v420, 113
        %v608 = vpop.permute.xlu0 %607
        %vm611 = vcmask 7168
        %v612 = vsel %vm611, 0.0, %v606
        %v613 = vsel %vm611, 0.0, %v608
        %vm614 = vcmask 138240
        %v615 = vsel %vm614, %v612, 0.0
        %v616 = vsel %vm614, %v613, 0.0
        %617 = vrot.lane.b32.xlu0 %v415, 97
        %v618 = vpop.permute.xlu0 %617
        %619 = vrot.lane.b32.xlu0 %v420, 97
        %v620 = vpop.permute.xlu0 %619
        %v623 = vsel %vm611, 0.0, %v618
        %v624 = vsel %vm611, 0.0, %v620
        %v625 = vsel %vm614, %v623, 0.0
        %v626 = vsel %vm614, %v624, 0.0
        %v627 = vmul.f32 %v601, %v615
        %v628 = vmul.f32 %v602, %v616
        %v629 = vsel %vm451, %v627, 0.0
        %v630 = vrot.slane %v629, 4
        %v631 = vadd.f32 %v629, %v630
        %v632 = vrot.slane %v631, 2
        %v633 = vadd.f32 %v631, %v632
        %v634 = vrot.slane %v633, 1
        %v635 = vadd.f32 %v633, %v634
        %v636 = vsel %vm451, %v628, 0.0
        %v637 = vrot.slane %v636, 4
        %v638 = vadd.f32 %v636, %v637
        %v639 = vrot.slane %v638, 2
        %v640 = vadd.f32 %v638, %v639
        %v641 = vrot.slane %v640, 1
        %v642 = vadd.f32 %v640, %v641
        %645 = vrot.lane.b32.xlu0 %v615, 127
        %v646 = vpop.permute.xlu0 %645
        %647 = vrot.lane.b32.xlu0 %v616, 127
        %v648 = vpop.permute.xlu0 %647
        %v651 = vmul.f32 %v601, %v646
        %v652 = vmul.f32 %v602, %v648
        %v653 = vsel %vm451, %v651, 0.0
        %v654 = vrot.slane %v653, 4
        %v655 = vadd.f32 %v653, %v654
        %v656 = vrot.slane %v655, 2
        %v657 = vadd.f32 %v655, %v656
        %v658 = vrot.slane %v657, 1
        %v659 = vadd.f32 %v657, %v658
        %v660 = vsel %vm451, %v652, 0.0
        %v661 = vrot.slane %v660, 4
        %v662 = vadd.f32 %v660, %v661
        %v663 = vrot.slane %v662, 2
        %v664 = vadd.f32 %v662, %v663
        %v665 = vrot.slane %v664, 1
        %v666 = vadd.f32 %v664, %v665
        %667 = vrot.lane.b32.xlu0 %v615, 126
        %v668 = vpop.permute.xlu0 %667
        %669 = vrot.lane.b32.xlu0 %v616, 126
        %v670 = vpop.permute.xlu0 %669
        %v673 = vmul.f32 %v601, %v668
        %v674 = vmul.f32 %v602, %v670
        %v675 = vsel %vm451, %v673, 0.0
        %v676 = vrot.slane %v675, 4
        %v677 = vadd.f32 %v675, %v676
        %v678 = vrot.slane %v677, 2
        %v679 = vadd.f32 %v677, %v678
        %v680 = vrot.slane %v679, 1
        %v681 = vadd.f32 %v679, %v680
        %v682 = vsel %vm451, %v674, 0.0
        %v683 = vrot.slane %v682, 4
        %v684 = vadd.f32 %v682, %v683
        %v685 = vrot.slane %v684, 2
        %v686 = vadd.f32 %v684, %v685
        %v687 = vrot.slane %v686, 1
        %v688 = vadd.f32 %v686, %v687
        %v689 = vmax.f32 %v635, %v659
        %v690 = vmax.f32 %v642, %v666
        %v691 = vmax.f32 %v689, %v681
        %v692 = vmax.f32 %v690, %v688
        %v693 = vsub.f32 %v635, %v691
        %v694 = vsub.f32 %v642, %v692
        %v695 = vmul.f32 %v693, 1.442695
        %v696 = vpow.pop %v695
        %v697 = vmul.f32 %v694, 1.442695
        %v698 = vpow.pop %v697
        %v699 = vadd.f32 %v696, 0.0
        %v700 = vadd.f32 %v698, 0.0
        %v701 = vmul.f32 %v696, %v625
        %v702 = vmul.f32 %v698, %v626
        %v703 = vadd.f32 %v701, 0.0
        %v704 = vadd.f32 %v702, 0.0
        %v705 = vsub.f32 %v659, %v691
        %v706 = vsub.f32 %v666, %v692
        %v707 = vmul.f32 %v705, 1.442695
        %v708 = vpow.pop %v707
        %v709 = vmul.f32 %v706, 1.442695
        %v710 = vpow.pop %v709
        %v711 = vadd.f32 %v699, %v708
        %v712 = vadd.f32 %v700, %v710
        %715 = vrot.lane.b32.xlu0 %v625, 127
        %v716 = vpop.permute.xlu0 %715
        %717 = vrot.lane.b32.xlu0 %v626, 127
        %v718 = vpop.permute.xlu0 %717
        %v721 = vmul.f32 %v708, %v716
        %v722 = vmul.f32 %v710, %v718
        %v723 = vadd.f32 %v703, %v721
        %v724 = vadd.f32 %v704, %v722
        %v725 = vsub.f32 %v681, %v691
        %v726 = vsub.f32 %v688, %v692
        %v727 = vmul.f32 %v725, 1.442695
        %v728 = vpow.pop %v727
        %v729 = vmul.f32 %v726, 1.442695
        %v730 = vpow.pop %v729
        %v731 = vadd.f32 %v711, %v728
        %v732 = vadd.f32 %v712, %v730
        %733 = vrot.lane.b32.xlu0 %v625, 126
        %v734 = vpop.permute.xlu0 %733
        %735 = vrot.lane.b32.xlu0 %v626, 126
        %v736 = vpop.permute.xlu0 %735
        %v739 = vmul.f32 %v728, %v734
        %v740 = vmul.f32 %v730, %v736
        %v741 = vadd.f32 %v723, %v739
        %v742 = vadd.f32 %v724, %v740
        %v743 = vrcp.pop %v731
        %v744 = vrcp.pop %v732
        %v745 = vmul.f32 %v731, %v743
        %v746 = vmul.f32 %v732, %v744
        %v747 = vsub.f32 2.0, %v745
        %v748 = vsub.f32 2.0, %v746
        %v749 = vmul.f32 %v743, %v747
        %v750 = vmul.f32 %v744, %v748
        %v751 = vmul.f32 %v696, %v749
        %v752 = vmul.f32 %v698, %v750
        %v755 = vsel %vm578, %v752, %v751
        %s757 = scalar_lea.vmem %s282, 6 [#allocation7]
        %758 = vst.msk [vmem:[%s757] sm:$0x3] %vm581, %v755
        %v759 = vmul.f32 %v708, %v749
        %v760 = vmul.f32 %v710, %v750
        %v763 = vsel %vm578, %v760, %v759
        %s765 = scalar_lea.vmem %s282, 8 [#allocation7]
        %766 = vst.msk [vmem:[%s765] sm:$0x3] %vm581, %v763
        %v767 = vmul.f32 %v728, %v749
        %v768 = vmul.f32 %v730, %v750
        %v771 = vsel %vm578, %v768, %v767
        %s773 = scalar_lea.vmem %s282, 10 [#allocation7]
        %774 = vst.msk [vmem:[%s773] sm:$0x3] %vm581, %v771
        %v775 = vmul.f32 %v741, %v749
        %v776 = vmul.f32 %v742, %v750
        %v777 = vld [vmem:[#allocation5] sm:$0xff]
        %v778 = vld [vmem:[#allocation5 + $0x8] sm:$0xff]
        %v779 = vld [vmem:[#allocation5 + $0x10] sm:$0xff]
        %v780 = vld [vmem:[#allocation5 + $0x18] sm:$0xff]
        %v781 = vld [vmem:[%s4] sm:$0xff]
        %v782 = vld [vmem:[%s4 + $0x8] sm:$0xff]
        %v783 = vld [vmem:[%s4 + $0x10] sm:$0xff]
        %v784 = vld [vmem:[%s4 + $0x18] sm:$0xff]
        %786 = vset.pattern.permute.xlu0 0
        %787 = vperm.xlu0 %786, %v781
        %v788 = vpop.permute.xlu0 %787
        %791 = vset.pattern.permute.xlu0 0
        %792 = vperm.xlu0 %791, %v782
        %v793 = vpop.permute.xlu0 %792
        %796 = vset.pattern.permute.xlu0 0
        %797 = vperm.xlu0 %796, %v783
        %v798 = vpop.permute.xlu0 %797
        %801 = vset.pattern.permute.xlu0 0
        %802 = vperm.xlu0 %801, %v784
        %v803 = vpop.permute.xlu0 %802
        %v806 = vsel %vm325, %v777, 0
        %v809 = vsel %vm325, %v778, 0
        %v812 = vsel %vm325, %v779, 0
        %v815 = vsel %vm325, %v780, 0
        %817 = vmatprep.subr.mxu0 0.0
        %818 = vmatpush1.msra.mxu0 %v599
        %819 = vmatprep.subr.mxu0 0.0
        %820 = vmatpush1.msra.mxu0 %v600
        %821 = vmatprep.subr.mxu0 0.0
        %822 = vmatpush1.msra.mxu0 %v775
        %823 = vmatprep.subr.mxu0 0.0
        %824 = vmatpush1.msra.mxu0 %v776
        %825 = vmatprep.subr.mxu0 0.0
        %826 = vmatpush1.msra.mxu0 0.0
        %827 = vmatprep.subr.mxu0 0.0
        %828 = vmatpush1.msra.mxu0 0.0
        %829 = vmatprep.subr.mxu0 0.0
        %830 = vmatpush1.msra.mxu0 0.0
        %831 = vmatprep.subr.mxu0 0.0
        %832 = vmatpush1.msra.mxu0 0.0
        %833 = vmatprep.subr.mxu0 0.0
        %834 = vmatpush1.msra.mxu0 0.0
        %835 = vmatprep.subr.mxu0 0.0
        %836 = vmatpush1.msra.mxu0 0.0
        %837 = vmatprep.subr.mxu0 0.0
        %838 = vmatpush1.msra.mxu0 0.0
        %839 = vmatprep.subr.mxu0 0.0
        %840 = vmatpush1.msra.mxu0 0.0
        %841 = vmatprep.subr.mxu0 0.0
        %842 = vmatpush1.msra.mxu0 0.0
        %843 = vmatprep.subr.mxu0 0.0
        %844 = vmatpush1.msra.mxu0 0.0
        %845 = vmatprep.subr.mxu0 0.0
        %846 = vmatpush1.msra.mxu0 0.0
        %847 = vmatprep.subr.mxu0 0.0
        %848 = vmatpush1.msra.mxu0 0.0
        %849 = vmatprep.subr.mxu0 0.0
        %850 = vmatpush1.msra.mxu0 0.0
        %851 = vmatprep.subr.mxu0 0.0
        %852 = vmatpush1.msra.mxu0 0.0
        %853 = vmatprep.subr.mxu0 0.0
        %854 = vmatpush1.msra.mxu0 0.0
        %855 = vmatprep.subr.mxu0 0.0
        %856 = vmatpush1.msra.mxu0 0.0
        %857 = vmatprep.subr.mxu0 0.0
        %858 = vmatpush1.msra.mxu0 0.0
        %859 = vmatprep.subr.mxu0 0.0
        %860 = vmatpush1.msra.mxu0 0.0
        %861 = vmatprep.subr.mxu0 0.0
        %862 = vmatpush1.msra.mxu0 0.0
        %863 = vmatprep.subr.mxu0 0.0
        %864 = vmatpush1.msra.mxu0 0.0
        %865 = vmatprep.subr.mxu0 0.0
        %866 = vmatpush1.msra.mxu0 0.0
        %867 = vmatprep.subr.mxu0 0.0
        %868 = vmatpush1.msra.mxu0 0.0
        %869 = vmatprep.subr.mxu0 0.0
        %870 = vmatpush1.msra.mxu0 0.0
        %871 = vmatprep.subr.mxu0 0.0
        %872 = vmatpush1.msra.mxu0 0.0
        %873 = vmatprep.subr.mxu0 0.0
        %874 = vmatpush1.msra.mxu0 0.0
        %875 = vmatprep.subr.mxu0 0.0
        %876 = vmatpush1.msra.mxu0 0.0
        %877 = vmatprep.subr.mxu0 0.0
        %878 = vmatpush1.msra.mxu0 0.0
        %879 = vmatprep.subr.mxu0 0.0
        %880 = vmatpush1.msra.mxu0 0.0
        %881 = vmatprep.mubr.f32.mxu0 0.0
        %882 = vmatmul.mubr.f32.gmra.mrb[0].mxu0 %v806
        %v883 = vpop.f32.mrb[0].mxu0
        %v884 = vadd.f32 %v788, %v883
        %v885 = vpop.f32.mrb[0].mxu0
        %886 = vmatprep.mubr.f32.mxu0 0.0
        %887 = vmatmul.mubr.f32.gmra.mrb[0].mxu0 %v809
        %v888 = vpop.f32.mrb[0].mxu0
        %v889 = vadd.f32 %v793, %v888
        %v890 = vpop.f32.mrb[0].mxu0
        %891 = vmatprep.mubr.f32.mxu0 0.0
        %892 = vmatmul.mubr.f32.gmra.mrb[0].mxu0 %v812
        %v893 = vpop.f32.mrb[0].mxu0
        %v894 = vadd.f32 %v798, %v893
        %v895 = vpop.f32.mrb[0].mxu0
        %896 = vmatprep.mubr.f32.mxu0 0.0
        %897 = vmatmul.mubr.f32.gmra.mrb[0].mxu0 %v815
        %v898 = vpop.f32.mrb[0].mxu0
        %v899 = vadd.f32 %v803, %v898
        %v900 = vpop.f32.mrb[0].mxu0
        %901 = vdwg.mxu0
        %902 = vst.msk [vmem:[%s292] sm:$0xff] %vm451, %v884
        %903 = vst.msk [vmem:[%s292 + $0x8] sm:$0xff] %vm451, %v889
        %904 = vst.msk [vmem:[%s292 + $0x10] sm:$0xff] %vm451, %v894
        %905 = vst.msk [vmem:[%s292 + $0x18] sm:$0xff] %vm451, %v899
        %p906 = scmp.lt.s32.totalorder %s23, 1
        %s907 = scalar_select %p906, %s23, 1
        %s908 = smul.addr %s907, 4
        %s909 = smul.addr %s908, 8
        %s910 = scalar_lea.vmem %s5, %s909
        %s911 = sand.u32 %s167, 1
        %s912 = scalar_lea.sflag [#allocation4], %s911
        %s913 = sand.u32 %s167, 1
        %s914 = smul.addr %s913, 12
        %s915 = scalar_lea.vmem [#allocation7], %s914
        // Predicated region
        $region49: #{tpu_custom_call.1} parent=39 // pred_check
          %p916 = pneg %p151
        $region50: #{tpu_custom_call.1} parent=39 // pred_check_branch
          %918 = sbr.rel (%p916) target = $region52
        $region51: #{tpu_custom_call.1} parent=39 // pred_region
          _
        $region52: #{tpu_custom_call.1} parent=39 // pred_fallthru
          _
        // Predicated region
        $region53: #{tpu_custom_call.1} parent=39 // pred_check
          %p919 = pneg %p177
        $region54: #{tpu_custom_call.1} parent=39 // pred_check_branch
          %921 = sbr.rel (%p919) target = $region56
        $region55: #{tpu_custom_call.1} parent=39 // pred_region
          %s923 = ssub.s32 192, 192
          %924 = vsyncadd %s912, %s923
          %s925 = smul.addr %s23, 6
          %s926 = smul.addr %s925, 32
          %s927 = scalar_lea.hbm %s6, %s926
          %s928 = sshll.u32 %s915, 4
          %s929 = int_to_ptr.vmem [resolvable:$true] %s928
          %934 = dma.vmem_to_hbm [thread:$0]  %s929, 192, %s927, %s912, 32, 32, 2
        $region56: #{tpu_custom_call.1} parent=39 // pred_fallthru
          _
      $region40: #{tpu_custom_call.1} parent=5 // pred_fallthru
        _
      %p935 = scmp.le.s32.totalorder 2, %s18
      // Predicated region
      $region57: #{tpu_custom_call.1} parent=5 // pred_check
        %p936 = pneg %p935
      $region58: #{tpu_custom_call.1} parent=5 // pred_check_branch
        %938 = sbr.rel (%p936) target = $region60
      $region59: #{tpu_custom_call.1} parent=5 // pred_region
        %s939 = ssub.s32 %s18, 2
        // Predicated region
        $region61: #{tpu_custom_call.1} parent=59 // pred_check
          %p940 = pneg %p157
        $region62: #{tpu_custom_call.1} parent=59 // pred_check_branch
          %942 = sbr.rel (%p940) target = $region64
        $region63: #{tpu_custom_call.1} parent=59 // pred_region
          %p943 = scmp.lt.s32.totalorder %s24, 1
          %s944 = scalar_select %p943, %s24, 1
          %s945 = smul.addr %s944, 4
          %s946 = smul.addr %s945, 8
          %s947 = scalar_lea.vmem %s5, %s946
        $region64: #{tpu_custom_call.1} parent=59 // pred_fallthru
          _
        // Predicated region
        $region65: #{tpu_custom_call.1} parent=59 // pred_check
          %p948 = pneg %p183
        $region66: #{tpu_custom_call.1} parent=59 // pred_check_branch
          %950 = sbr.rel (%p948) target = $region68
        $region67: #{tpu_custom_call.1} parent=59 // pred_region
          %s951 = sand.u32 %s168, 1
          %s952 = scalar_lea.sflag [#allocation4], %s951
          %s953 = sand.u32 %s168, 1
          %s954 = smul.addr %s953, 12
          %s955 = scalar_lea.vmem [#allocation7], %s954
          %956 = dma.done %s952, 192
        $region68: #{tpu_custom_call.1} parent=59 // pred_fallthru
          _
      $region60: #{tpu_custom_call.1} parent=5 // pred_fallthru
        _
    $region6: #{tpu_custom_call.1} parent=1 // loop_footer
      %s22 = sadd.s32 1, %s18
    $region7: #{tpu_custom_call.1} parent=1 // loop_footer_branch
      %17 = sbr.rel target = $region3
    $region8: #{tpu_custom_call.1} parent=1 // loop_exit
      _
    %957 = vsyncpa [#allocation3], 1
    %s958 = scalar_lea.sflag [#allocation3], 1
    %959 = vsyncpa %s958, 1
    %960 = vsyncpa [#allocation6], 1
    %961 = vsyncpa [#allocation4], 1
    %s962 = scalar_lea.sflag [#allocation4], 1
    %963 = vsyncpa %s962, 1

</llo_original>
